<compile_context>
chip_gen: v7x
topology: tpu7x:2x2x1
jax: 0.10.0
libtpu: 0.0.40
codegen_flags: <defaults>
</compile_context>

<pallas_src>
import functools
import math

import jax
import jax.numpy as jnp
from jax.experimental import pallas as pl
from jax.experimental.pallas import tpu as pltpu

# ----------------------------------------------------------------------------
# cfg / smpl_x constants (small synthetic configuration)
# ----------------------------------------------------------------------------
FOCAL = (5000.0, 5000.0)
PRINCPT = (96.0, 128.0)
CAMERA_3D_SIZE = 2.5
INPUT_BODY_SHAPE = (256, 192)    # (H, W)
OUTPUT_HM_SHAPE = (8, 8, 6)      # (D, H, W)

NUM_JOINTS = 40                  # synthetic smpl_x.joint_idx set
NUM_VERTS = 64                   # synthetic mesh vertex count
ROOT_JOINT_IDX = 0
LWRIST_IDX = 4
RWRIST_IDX = 8
NECK_IDX = 12
LHAND_IDX = (20, 24)             # inclusive lane range (smpl_x.joint_part['lhand'])
RHAND_IDX = (25, 29)
FACE_IDX = (30, 39)

PARAM_DIM = 64                   # stand-in pose+shape parameter vector size
NPAD = 128                       # lane padding: every block is 128-lane dense
N_W_ROWS = 7                     # joint x/y/z, vertex x/y/z, camera head
N_OUT_ROWS = 9                   # proj x/y, jrel x/y/z, mesh x/y/z, cam row

_K_VALUE = math.sqrt(
    FOCAL[0] * FOCAL[1] * CAMERA_3D_SIZE * CAMERA_3D_SIZE
    / (INPUT_BODY_SHAPE[0] * INPUT_BODY_SHAPE[1]))


def _vmem_spec():
    return pl.BlockSpec(memory_space=pltpu.MemorySpace.VMEM)


# ----------------------------------------------------------------------------
# Single fused kernel: pool -> (precomposed) regressor -> camera -> get_coord
# ----------------------------------------------------------------------------
def _fused_model_kernel(img_ref, w_ref, out_ref, *, k_value):
    # --- backbone stand-in: global average pool over H*W (256-wide lane axis)
    feat = jnp.mean(img_ref[...], axis=2)                        # [B, C] f32

    # --- precomposed regressor + camera head: ONE bf16 MXU matmul produces
    #     absolute joint/vertex coords (6 lane blocks) and cam params (block 6).
    coords = jnp.dot(feat.astype(jnp.bfloat16), w_ref[...],
                     preferred_element_type=jnp.float32)         # [B, 7*NPAD]

    # 128-aligned lane slices (free, no relayout)
    jx = coords[:, 0 * NPAD:1 * NPAD]
    jy = coords[:, 1 * NPAD:2 * NPAD]
    jz = coords[:, 2 * NPAD:3 * NPAD]
    vx = coords[:, 3 * NPAD:4 * NPAD]
    vy = coords[:, 4 * NPAD:5 * NPAD]
    vz = coords[:, 5 * NPAD:6 * NPAD]
    cam = coords[:, 6 * NPAD:7 * NPAD]

    # --- get_camera_trans: sigmoid gate on z, scaled by k (EUP)
    t_x = cam[:, 0:1]                                            # [B, 1]
    t_y = cam[:, 1:2]
    t_z = jax.nn.sigmoid(cam[:, 2:3]) * k_value

    # --- perspective projection (absolute joint_cam + cam_trans), f32 VPU math
    denom = jz + t_z + 1e-4
    px = (jx + t_x) / denom * FOCAL[0] + PRINCPT[0]
    py = (jy + t_y) / denom * FOCAL[1] + PRINCPT[1]
    px = px / INPUT_BODY_SHAPE[1] * OUTPUT_HM_SHAPE[2]
    py = py / INPUT_BODY_SHAPE[0] * OUTPUT_HM_SHAPE[1]

    # --- relative joints: (j-root)-(wrist-root) == j-wrist, so each joint
    #     subtracts ONE reference joint selected per lane (where-chain, hoisted
    #     masks; pure VPU, no per-batch loop).
    lane = jax.lax.broadcasted_iota(jnp.int32, (1, NPAD), 1)
    in_lh = (lane >= LHAND_IDX[0]) & (lane <= LHAND_IDX[1])
    in_rh = (lane >= RHAND_IDX[0]) & (lane <= RHAND_IDX[1])
    in_fc = (lane >= FACE_IDX[0]) & (lane <= FACE_IDX[1])

    def rel(j):
        ref = jnp.where(
            in_lh, j[:, LWRIST_IDX:LWRIST_IDX + 1],
            jnp.where(
                in_rh, j[:, RWRIST_IDX:RWRIST_IDX + 1],
                jnp.where(in_fc, j[:, NECK_IDX:NECK_IDX + 1],
                          j[:, ROOT_JOINT_IDX:ROOT_JOINT_IDX + 1])))
        return j - ref

    # camera row packed into the output slab (t_x, t_y, t_z in lanes 0..2)
    cam_row = jnp.where(lane == 0, t_x,
              jnp.where(lane == 1, t_y,
              jnp.where(lane == 2, t_z, 0.0)))                   # [B, NPAD]

    # --- ONE coalesced lane-dense output slab; every store is a 128-aligned
    #     unmasked full-lane store.
    out_ref[:, 0 * NPAD:1 * NPAD] = px
    out_ref[:, 1 * NPAD:2 * NPAD] = py
    out_ref[:, 2 * NPAD:3 * NPAD] = rel(jx)
    out_ref[:, 3 * NPAD:4 * NPAD] = rel(jy)
    out_ref[:, 4 * NPAD:5 * NPAD] = rel(jz)
    out_ref[:, 5 * NPAD:6 * NPAD] = vx + t_x                     # mesh + cam
    out_ref[:, 6 * NPAD:7 * NPAD] = vy + t_y
    out_ref[:, 7 * NPAD:8 * NPAD] = vz + t_z
    out_ref[:, 8 * NPAD:9 * NPAD] = cam_row


# ----------------------------------------------------------------------------
# host-side glue
# ----------------------------------------------------------------------------
def pack_weights(w_head, w_joints, w_verts):
    """One-time host-side packing + precomposition into the kernel layout.

    w_head   [C, PARAM_DIM+3]                (param head + camera head)
    w_joints [PARAM_DIM, J*3] xyz-interleaved
    w_verts  [PARAM_DIM, V*3] xyz-interleaved
      -> w_pack [C, 7*NPAD] bf16:
         lane blocks 0..2 = joint x/y/z, 3..5 = vertex x/y/z (the param head is
         folded into the regressor: coords = feat @ (w_param @ w_coord)),
         block 6 = camera head in lanes 0..2, everything else zero.
    """
    c = w_head.shape[0]
    w_param = w_head[:, :PARAM_DIM]                           # [C, P]
    w_cam = w_head[:, PARAM_DIM:PARAM_DIM + 3]                # [C, 3]

    wj = w_joints.reshape(PARAM_DIM, NUM_JOINTS, 3).transpose(0, 2, 1)  # [P,3,J]
    wv = w_verts.reshape(PARAM_DIM, NUM_VERTS, 3).transpose(0, 2, 1)    # [P,3,V]
    w_coord = jnp.zeros((PARAM_DIM, 6, NPAD), jnp.float32)
    w_coord = w_coord.at[:, 0:3, :NUM_JOINTS].set(wj)
    w_coord = w_coord.at[:, 3:6, :NUM_VERTS].set(wv)
    w_coord = w_coord.reshape(PARAM_DIM, 6 * NPAD)

    w_comb = w_param @ w_coord                                # [C, 6*NPAD]
    w_cam_pad = jnp.zeros((c, NPAD), jnp.float32).at[:, :3].set(w_cam)
    w_pack = jnp.concatenate((w_comb, w_cam_pad), axis=1)     # [C, 7*NPAD]
    return w_pack.astype(jnp.bfloat16)


@jax.jit
def model_forward(img, w_pack):
    B, C, H, W = img.shape
    img_flat = img.reshape(B, C, H * W)        # free reshape: H, W contiguous

    slab = pl.pallas_call(
        functools.partial(_fused_model_kernel, k_value=_K_VALUE),
        out_shape=jax.ShapeDtypeStruct((B, N_OUT_ROWS * NPAD), jnp.float32),
        in_specs=[_vmem_spec(), _vmem_spec()],
        out_specs=_vmem_spec(),
        cost_estimate=pl.CostEstimate(
            flops=2 * B * C * N_W_ROWS * NPAD + 32 * B * NPAD,
            transcendentals=B * (1 + 2 * NPAD),
            bytes_accessed=(img_flat.size * 4 + w_pack.size * 2
                            + B * N_OUT_ROWS * NPAD * 4)),
    )(img_flat, w_pack)

    # wrapper-side layout plumbing only: un-pad lanes, restore torch layouts.
    slab = slab.reshape(B, N_OUT_ROWS, NPAD)
    joint_proj = jnp.stack((slab[:, 0, :NUM_JOINTS],
                            slab[:, 1, :NUM_JOINTS]), axis=2)       # [B, J, 2]
    joint_cam = jnp.stack((slab[:, 2, :NUM_JOINTS],
                           slab[:, 3, :NUM_JOINTS],
                           slab[:, 4, :NUM_JOINTS]), axis=2)        # [B, J, 3]
    mesh_cam = jnp.stack((slab[:, 5, :NUM_VERTS],
                          slab[:, 6, :NUM_VERTS],
                          slab[:, 7, :NUM_VERTS]), axis=2)          # [B, V, 3]
    cam_trans = slab[:, 8, :3]                                      # [B, 3]

    return {
        "joint_proj": joint_proj,       # [B, J, 2]
        "joint_cam": joint_cam,         # [B, J, 3] root/wrist/neck-relative
        "smplx_mesh_cam": mesh_cam,     # [B, V, 3] camera-translated mesh
        "cam_trans": cam_trans,         # [B, 3]
    }


if __name__ == "__main__":
    key = jax.random.PRNGKey(0)
    k_img, k_head, k_wj, k_wv = jax.random.split(key, 4)

    B, C, H, W = 2, 4, 16, 16
    img = jax.random.normal(k_img, (B, C, H, W), jnp.float32)

    # deterministic synthetic parameters (natural torch-style layouts)
    w_head = 0.05 * jax.random.normal(k_head, (C, PARAM_DIM + 3), jnp.float32)
    w_joints = 0.05 * jax.random.normal(k_wj, (PARAM_DIM, NUM_JOINTS * 3),
                                        jnp.float32)
    w_verts = 0.05 * jax.random.normal(k_wv, (PARAM_DIM, NUM_VERTS * 3),
                                       jnp.float32)
    # push joints/verts in front of the camera (positive z), like a real mesh
    w_joints = w_joints.at[:, 2::3].add(0.1)
    w_verts = w_verts.at[:, 2::3].add(0.1)

    w_pack = pack_weights(w_head, w_joints, w_verts)

    out = model_forward(img, w_pack)
    out = jax.tree_util.tree_map(jax.block_until_ready, out)

    assert out["joint_proj"].shape == (B, NUM_JOINTS, 2)
    assert out["joint_cam"].shape == (B, NUM_JOINTS, 3)
    assert out["smplx_mesh_cam"].shape == (B, NUM_VERTS, 3)
    assert out["cam_trans"].shape == (B, 3)
    assert all(bool(jnp.all(jnp.isfinite(v))) for v in out.values())
    # root joint must be exactly zero after the relative-coordinate reduction
    assert bool(jnp.all(out["joint_cam"][:, ROOT_JOINT_IDX, :] == 0.0))

    print("KERNEL_OK")
</pallas_src>

<mosaic_0001>
module attributes {stable_mosaic.version = 11 : i64} {
  func.func @_fused_model_kernel(%arg0: memref<2x4x256xf32, #tpu.memory_space<vmem>>, %arg1: memref<4x896xbf16, #tpu.memory_space<vmem>>, %arg2: memref<2x1152xf32, #tpu.memory_space<vmem>>) attributes {dimension_semantics = [], scalar_prefetch = 0 : i64, scratch_operands = 0 : i64, tpu.core_type = #tpu.core_type<tc>} {
    %c0 = arith.constant 0 : index
    %c0_0 = arith.constant 0 : index
    %c0_1 = arith.constant 0 : index
    %0 = vector.load %arg0[%c0, %c0_0, %c0_1] : memref<2x4x256xf32, #tpu.memory_space<vmem>>, vector<2x4x256xf32>
    %cst = arith.constant dense<0.000000e+00> : vector<2x4xf32>
    %1 = vector.multi_reduction <add>, %0, %cst [2] : vector<2x4x256xf32> to vector<2x4xf32>
    %cst_2 = arith.constant 2.560000e+02 : f32
    %2 = vector.broadcast %cst_2 : f32 to vector<2x4xf32>
    %3 = arith.divf %1, %2 : vector<2x4xf32>
    %4 = arith.truncf %3 : vector<2x4xf32> to vector<2x4xbf16>
    %c0_3 = arith.constant 0 : index
    %c0_4 = arith.constant 0 : index
    %5 = vector.load %arg1[%c0_3, %c0_4] : memref<4x896xbf16, #tpu.memory_space<vmem>>, vector<4x896xbf16>
    %cst_5 = arith.constant dense<0.000000e+00> : vector<2x896xf32>
    %6 = tpu.matmul %4, %5, %cst_5 {dimension_numbers = #tpu.dot_dimension_numbers<[1], [0], [0], [1], [0, 0, 1, 1], [], []>} : vector<2x4xbf16>, vector<4x896xbf16>, vector<2x896xf32> -> vector<2x896xf32>
    %7 = vector.extract_strided_slice %6 {offsets = [0, 0], sizes = [2, 128], strides = [1, 1]} : vector<2x896xf32> to vector<2x128xf32>
    %8 = vector.extract_strided_slice %6 {offsets = [0, 128], sizes = [2, 128], strides = [1, 1]} : vector<2x896xf32> to vector<2x128xf32>
    %9 = vector.extract_strided_slice %6 {offsets = [0, 256], sizes = [2, 128], strides = [1, 1]} : vector<2x896xf32> to vector<2x128xf32>
    %10 = vector.extract_strided_slice %6 {offsets = [0, 384], sizes = [2, 128], strides = [1, 1]} : vector<2x896xf32> to vector<2x128xf32>
    %11 = vector.extract_strided_slice %6 {offsets = [0, 512], sizes = [2, 128], strides = [1, 1]} : vector<2x896xf32> to vector<2x128xf32>
    %12 = vector.extract_strided_slice %6 {offsets = [0, 640], sizes = [2, 128], strides = [1, 1]} : vector<2x896xf32> to vector<2x128xf32>
    %13 = vector.extract_strided_slice %6 {offsets = [0, 768], sizes = [2, 128], strides = [1, 1]} : vector<2x896xf32> to vector<2x128xf32>
    %14 = vector.extract_strided_slice %13 {offsets = [0, 0], sizes = [2, 1], strides = [1, 1]} : vector<2x128xf32> to vector<2x1xf32>
    %15 = vector.extract_strided_slice %13 {offsets = [0, 1], sizes = [2, 1], strides = [1, 1]} : vector<2x128xf32> to vector<2x1xf32>
    %16 = vector.extract_strided_slice %13 {offsets = [0, 2], sizes = [2, 1], strides = [1, 1]} : vector<2x128xf32> to vector<2x1xf32>
    %17 = arith.negf %16 : vector<2x1xf32>
    %18 = math.exp %17 : vector<2x1xf32>
    %cst_6 = arith.constant 1.000000e+00 : f32
    %19 = vector.broadcast %cst_6 : f32 to vector<2x1xf32>
    %20 = arith.addf %19, %18 : vector<2x1xf32>
    %21 = arith.divf %19, %20 : vector<2x1xf32>
    %cst_7 = arith.constant 56.3818626 : f32
    %22 = vector.broadcast %cst_7 : f32 to vector<2x1xf32>
    %23 = arith.mulf %21, %22 : vector<2x1xf32>
    %24 = vector.broadcast %23 : vector<2x1xf32> to vector<2x128xf32>
    %25 = arith.addf %9, %24 : vector<2x128xf32>
    %cst_8 = arith.constant 9.99999974E-5 : f32
    %26 = vector.broadcast %cst_8 : f32 to vector<2x128xf32>
    %27 = arith.addf %25, %26 : vector<2x128xf32>
    %28 = vector.broadcast %14 : vector<2x1xf32> to vector<2x128xf32>
    %29 = arith.addf %7, %28 : vector<2x128xf32>
    %30 = arith.divf %29, %27 : vector<2x128xf32>
    %cst_9 = arith.constant 5.000000e+03 : f32
    %31 = vector.broadcast %cst_9 : f32 to vector<2x128xf32>
    %32 = arith.mulf %30, %31 : vector<2x128xf32>
    %cst_10 = arith.constant 9.600000e+01 : f32
    %33 = vector.broadcast %cst_10 : f32 to vector<2x128xf32>
    %34 = arith.addf %32, %33 : vector<2x128xf32>
    %35 = vector.broadcast %15 : vector<2x1xf32> to vector<2x128xf32>
    %36 = arith.addf %8, %35 : vector<2x128xf32>
    %37 = arith.divf %36, %27 : vector<2x128xf32>
    %cst_11 = arith.constant 5.000000e+03 : f32
    %38 = vector.broadcast %cst_11 : f32 to vector<2x128xf32>
    %39 = arith.mulf %37, %38 : vector<2x128xf32>
    %cst_12 = arith.constant 1.280000e+02 : f32
    %40 = vector.broadcast %cst_12 : f32 to vector<2x128xf32>
    %41 = arith.addf %39, %40 : vector<2x128xf32>
    %cst_13 = arith.constant 1.920000e+02 : f32
    %42 = vector.broadcast %cst_13 : f32 to vector<2x128xf32>
    %43 = arith.divf %34, %42 : vector<2x128xf32>
    %cst_14 = arith.constant 6.000000e+00 : f32
    %44 = vector.broadcast %cst_14 : f32 to vector<2x128xf32>
    %45 = arith.mulf %43, %44 : vector<2x128xf32>
    %cst_15 = arith.constant 2.560000e+02 : f32
    %46 = vector.broadcast %cst_15 : f32 to vector<2x128xf32>
    %47 = arith.divf %41, %46 : vector<2x128xf32>
    %cst_16 = arith.constant 8.000000e+00 : f32
    %48 = vector.broadcast %cst_16 : f32 to vector<2x128xf32>
    %49 = arith.mulf %47, %48 : vector<2x128xf32>
    %50 = tpu.iota {dimensions = array<i32: 1>} : vector<1x128xi32>
    %c20_i32 = arith.constant 20 : i32
    %51 = vector.broadcast %c20_i32 : i32 to vector<1x128xi32>
    %52 = arith.cmpi sge, %50, %51 : vector<1x128xi32>
    %c24_i32 = arith.constant 24 : i32
    %53 = vector.broadcast %c24_i32 : i32 to vector<1x128xi32>
    %54 = arith.cmpi sle, %50, %53 : vector<1x128xi32>
    %55 = arith.andi %52, %54 : vector<1x128xi1>
    %c25_i32 = arith.constant 25 : i32
    %56 = vector.broadcast %c25_i32 : i32 to vector<1x128xi32>
    %57 = arith.cmpi sge, %50, %56 : vector<1x128xi32>
    %c29_i32 = arith.constant 29 : i32
    %58 = vector.broadcast %c29_i32 : i32 to vector<1x128xi32>
    %59 = arith.cmpi sle, %50, %58 : vector<1x128xi32>
    %60 = arith.andi %57, %59 : vector<1x128xi1>
    %c30_i32 = arith.constant 30 : i32
    %61 = vector.broadcast %c30_i32 : i32 to vector<1x128xi32>
    %62 = arith.cmpi sge, %50, %61 : vector<1x128xi32>
    %c39_i32 = arith.constant 39 : i32
    %63 = vector.broadcast %c39_i32 : i32 to vector<1x128xi32>
    %64 = arith.cmpi sle, %50, %63 : vector<1x128xi32>
    %65 = arith.andi %62, %64 : vector<1x128xi1>
    %c0_i32 = arith.constant 0 : i32
    %66 = vector.broadcast %c0_i32 : i32 to vector<1x128xi32>
    %67 = arith.cmpi eq, %50, %66 : vector<1x128xi32>
    %c1_i32 = arith.constant 1 : i32
    %68 = vector.broadcast %c1_i32 : i32 to vector<1x128xi32>
    %69 = arith.cmpi eq, %50, %68 : vector<1x128xi32>
    %c2_i32 = arith.constant 2 : i32
    %70 = vector.broadcast %c2_i32 : i32 to vector<1x128xi32>
    %71 = arith.cmpi eq, %50, %70 : vector<1x128xi32>
    %cst_17 = arith.constant 0.000000e+00 : f32
    %72 = vector.shape_cast %71 : vector<1x128xi1> to vector<1x128xi1>
    %73 = vector.broadcast %72 : vector<1x128xi1> to vector<2x128xi1>
    %74 = vector.shape_cast %23 : vector<2x1xf32> to vector<2x1xf32>
    %75 = vector.broadcast %74 : vector<2x1xf32> to vector<2x128xf32>
    %76 = vector.broadcast %cst_17 : f32 to vector<2x128xf32>
    %77 = arith.select %73, %75, %76 : vector<2x128xi1>, vector<2x128xf32>
    %78 = vector.shape_cast %69 : vector<1x128xi1> to vector<1x128xi1>
    %79 = vector.broadcast %78 : vector<1x128xi1> to vector<2x128xi1>
    %80 = vector.shape_cast %15 : vector<2x1xf32> to vector<2x1xf32>
    %81 = vector.broadcast %80 : vector<2x1xf32> to vector<2x128xf32>
    %82 = arith.select %79, %81, %77 : vector<2x128xi1>, vector<2x128xf32>
    %83 = vector.shape_cast %67 : vector<1x128xi1> to vector<1x128xi1>
    %84 = vector.broadcast %83 : vector<1x128xi1> to vector<2x128xi1>
    %85 = vector.shape_cast %14 : vector<2x1xf32> to vector<2x1xf32>
    %86 = vector.broadcast %85 : vector<2x1xf32> to vector<2x128xf32>
    %87 = arith.select %84, %86, %82 : vector<2x128xi1>, vector<2x128xf32>
    %c0_18 = arith.constant 0 : index
    %c0_19 = arith.constant 0 : index
    %88 = vector.load %arg2[%c0_18, %c0_19] : memref<2x1152xf32, #tpu.memory_space<vmem>>, vector<2x128xf32>
    tpu.vector_store %arg2[%c0_18, %c0_19], %45 {strides = array<i32>} : memref<2x1152xf32, #tpu.memory_space<vmem>>, vector<2x128xf32>,
    %c0_20 = arith.constant 0 : index
    %c128 = arith.constant 128 : index
    %89 = vector.load %arg2[%c0_20, %c128] : memref<2x1152xf32, #tpu.memory_space<vmem>>, vector<2x128xf32>
    tpu.vector_store %arg2[%c0_20, %c128], %49 {strides = array<i32>} : memref<2x1152xf32, #tpu.memory_space<vmem>>, vector<2x128xf32>,
    %90 = vector.extract_strided_slice %7 {offsets = [0, 4], sizes = [2, 1], strides = [1, 1]} : vector<2x128xf32> to vector<2x1xf32>
    %91 = vector.extract_strided_slice %7 {offsets = [0, 8], sizes = [2, 1], strides = [1, 1]} : vector<2x128xf32> to vector<2x1xf32>
    %92 = vector.extract_strided_slice %7 {offsets = [0, 12], sizes = [2, 1], strides = [1, 1]} : vector<2x128xf32> to vector<2x1xf32>
    %93 = vector.extract_strided_slice %7 {offsets = [0, 0], sizes = [2, 1], strides = [1, 1]} : vector<2x128xf32> to vector<2x1xf32>
    %94 = vector.shape_cast %65 : vector<1x128xi1> to vector<1x128xi1>
    %95 = vector.broadcast %94 : vector<1x128xi1> to vector<2x128xi1>
    %96 = vector.shape_cast %92 : vector<2x1xf32> to vector<2x1xf32>
    %97 = vector.broadcast %96 : vector<2x1xf32> to vector<2x128xf32>
    %98 = vector.shape_cast %93 : vector<2x1xf32> to vector<2x1xf32>
    %99 = vector.broadcast %98 : vector<2x1xf32> to vector<2x128xf32>
    %100 = arith.select %95, %97, %99 : vector<2x128xi1>, vector<2x128xf32>
    %101 = vector.shape_cast %60 : vector<1x128xi1> to vector<1x128xi1>
    %102 = vector.broadcast %101 : vector<1x128xi1> to vector<2x128xi1>
    %103 = vector.shape_cast %91 : vector<2x1xf32> to vector<2x1xf32>
    %104 = vector.broadcast %103 : vector<2x1xf32> to vector<2x128xf32>
    %105 = arith.select %102, %104, %100 : vector<2x128xi1>, vector<2x128xf32>
    %106 = vector.shape_cast %55 : vector<1x128xi1> to vector<1x128xi1>
    %107 = vector.broadcast %106 : vector<1x128xi1> to vector<2x128xi1>
    %108 = vector.shape_cast %90 : vector<2x1xf32> to vector<2x1xf32>
    %109 = vector.broadcast %108 : vector<2x1xf32> to vector<2x128xf32>
    %110 = arith.select %107, %109, %105 : vector<2x128xi1>, vector<2x128xf32>
    %111 = arith.subf %7, %110 : vector<2x128xf32>
    %c0_21 = arith.constant 0 : index
    %c256 = arith.constant 256 : index
    %112 = vector.load %arg2[%c0_21, %c256] : memref<2x1152xf32, #tpu.memory_space<vmem>>, vector<2x128xf32>
    tpu.vector_store %arg2[%c0_21, %c256], %111 {strides = array<i32>} : memref<2x1152xf32, #tpu.memory_space<vmem>>, vector<2x128xf32>,
    %113 = vector.extract_strided_slice %8 {offsets = [0, 4], sizes = [2, 1], strides = [1, 1]} : vector<2x128xf32> to vector<2x1xf32>
    %114 = vector.extract_strided_slice %8 {offsets = [0, 8], sizes = [2, 1], strides = [1, 1]} : vector<2x128xf32> to vector<2x1xf32>
    %115 = vector.extract_strided_slice %8 {offsets = [0, 12], sizes = [2, 1], strides = [1, 1]} : vector<2x128xf32> to vector<2x1xf32>
    %116 = vector.extract_strided_slice %8 {offsets = [0, 0], sizes = [2, 1], strides = [1, 1]} : vector<2x128xf32> to vector<2x1xf32>
    %117 = vector.shape_cast %65 : vector<1x128xi1> to vector<1x128xi1>
    %118 = vector.broadcast %117 : vector<1x128xi1> to vector<2x128xi1>
    %119 = vector.shape_cast %115 : vector<2x1xf32> to vector<2x1xf32>
    %120 = vector.broadcast %119 : vector<2x1xf32> to vector<2x128xf32>
    %121 = vector.shape_cast %116 : vector<2x1xf32> to vector<2x1xf32>
    %122 = vector.broadcast %121 : vector<2x1xf32> to vector<2x128xf32>
    %123 = arith.select %118, %120, %122 : vector<2x128xi1>, vector<2x128xf32>
    %124 = vector.shape_cast %60 : vector<1x128xi1> to vector<1x128xi1>
    %125 = vector.broadcast %124 : vector<1x128xi1> to vector<2x128xi1>
    %126 = vector.shape_cast %114 : vector<2x1xf32> to vector<2x1xf32>
    %127 = vector.broadcast %126 : vector<2x1xf32> to vector<2x128xf32>
    %128 = arith.select %125, %127, %123 : vector<2x128xi1>, vector<2x128xf32>
    %129 = vector.shape_cast %55 : vector<1x128xi1> to vector<1x128xi1>
    %130 = vector.broadcast %129 : vector<1x128xi1> to vector<2x128xi1>
    %131 = vector.shape_cast %113 : vector<2x1xf32> to vector<2x1xf32>
    %132 = vector.broadcast %131 : vector<2x1xf32> to vector<2x128xf32>
    %133 = arith.select %130, %132, %128 : vector<2x128xi1>, vector<2x128xf32>
    %134 = arith.subf %8, %133 : vector<2x128xf32>
    %c0_22 = arith.constant 0 : index
    %c384 = arith.constant 384 : index
    %135 = vector.load %arg2[%c0_22, %c384] : memref<2x1152xf32, #tpu.memory_space<vmem>>, vector<2x128xf32>
    tpu.vector_store %arg2[%c0_22, %c384], %134 {strides = array<i32>} : memref<2x1152xf32, #tpu.memory_space<vmem>>, vector<2x128xf32>,
    %136 = vector.extract_strided_slice %9 {offsets = [0, 4], sizes = [2, 1], strides = [1, 1]} : vector<2x128xf32> to vector<2x1xf32>
    %137 = vector.extract_strided_slice %9 {offsets = [0, 8], sizes = [2, 1], strides = [1, 1]} : vector<2x128xf32> to vector<2x1xf32>
    %138 = vector.extract_strided_slice %9 {offsets = [0, 12], sizes = [2, 1], strides = [1, 1]} : vector<2x128xf32> to vector<2x1xf32>
    %139 = vector.extract_strided_slice %9 {offsets = [0, 0], sizes = [2, 1], strides = [1, 1]} : vector<2x128xf32> to vector<2x1xf32>
    %140 = vector.shape_cast %65 : vector<1x128xi1> to vector<1x128xi1>
    %141 = vector.broadcast %140 : vector<1x128xi1> to vector<2x128xi1>
    %142 = vector.shape_cast %138 : vector<2x1xf32> to vector<2x1xf32>
    %143 = vector.broadcast %142 : vector<2x1xf32> to vector<2x128xf32>
    %144 = vector.shape_cast %139 : vector<2x1xf32> to vector<2x1xf32>
    %145 = vector.broadcast %144 : vector<2x1xf32> to vector<2x128xf32>
    %146 = arith.select %141, %143, %145 : vector<2x128xi1>, vector<2x128xf32>
    %147 = vector.shape_cast %60 : vector<1x128xi1> to vector<1x128xi1>
    %148 = vector.broadcast %147 : vector<1x128xi1> to vector<2x128xi1>
    %149 = vector.shape_cast %137 : vector<2x1xf32> to vector<2x1xf32>
    %150 = vector.broadcast %149 : vector<2x1xf32> to vector<2x128xf32>
    %151 = arith.select %148, %150, %146 : vector<2x128xi1>, vector<2x128xf32>
    %152 = vector.shape_cast %55 : vector<1x128xi1> to vector<1x128xi1>
    %153 = vector.broadcast %152 : vector<1x128xi1> to vector<2x128xi1>
    %154 = vector.shape_cast %136 : vector<2x1xf32> to vector<2x1xf32>
    %155 = vector.broadcast %154 : vector<2x1xf32> to vector<2x128xf32>
    %156 = arith.select %153, %155, %151 : vector<2x128xi1>, vector<2x128xf32>
    %157 = arith.subf %9, %156 : vector<2x128xf32>
    %c0_23 = arith.constant 0 : index
    %c512 = arith.constant 512 : index
    %158 = vector.load %arg2[%c0_23, %c512] : memref<2x1152xf32, #tpu.memory_space<vmem>>, vector<2x128xf32>
    tpu.vector_store %arg2[%c0_23, %c512], %157 {strides = array<i32>} : memref<2x1152xf32, #tpu.memory_space<vmem>>, vector<2x128xf32>,
    %159 = vector.broadcast %14 : vector<2x1xf32> to vector<2x128xf32>
    %160 = arith.addf %10, %159 : vector<2x128xf32>
    %c0_24 = arith.constant 0 : index
    %c640 = arith.constant 640 : index
    %161 = vector.load %arg2[%c0_24, %c640] : memref<2x1152xf32, #tpu.memory_space<vmem>>, vector<2x128xf32>
    tpu.vector_store %arg2[%c0_24, %c640], %160 {strides = array<i32>} : memref<2x1152xf32, #tpu.memory_space<vmem>>, vector<2x128xf32>,
    %162 = vector.broadcast %15 : vector<2x1xf32> to vector<2x128xf32>
    %163 = arith.addf %11, %162 : vector<2x128xf32>
    %c0_25 = arith.constant 0 : index
    %c768 = arith.constant 768 : index
    %164 = vector.load %arg2[%c0_25, %c768] : memref<2x1152xf32, #tpu.memory_space<vmem>>, vector<2x128xf32>
    tpu.vector_store %arg2[%c0_25, %c768], %163 {strides = array<i32>} : memref<2x1152xf32, #tpu.memory_space<vmem>>, vector<2x128xf32>,
    %165 = vector.broadcast %23 : vector<2x1xf32> to vector<2x128xf32>
    %166 = arith.addf %12, %165 : vector<2x128xf32>
    %c0_26 = arith.constant 0 : index
    %c896 = arith.constant 896 : index
    %167 = vector.load %arg2[%c0_26, %c896] : memref<2x1152xf32, #tpu.memory_space<vmem>>, vector<2x128xf32>
    tpu.vector_store %arg2[%c0_26, %c896], %166 {strides = array<i32>} : memref<2x1152xf32, #tpu.memory_space<vmem>>, vector<2x128xf32>,
    %c0_27 = arith.constant 0 : index
    %c1024 = arith.constant 1024 : index
    %168 = vector.load %arg2[%c0_27, %c1024] : memref<2x1152xf32, #tpu.memory_space<vmem>>, vector<2x128xf32>
    tpu.vector_store %arg2[%c0_27, %c1024], %87 {strides = array<i32>} : memref<2x1152xf32, #tpu.memory_space<vmem>>, vector<2x128xf32>,
    return
  }
}

</mosaic_0001>

<llo_original>
// kernel: model_forward.1
$region0: #{model_forward.1}
  #allocation0 [shape = 'u32[]', space=smem, size = 0x4, offset = 0x4, fixed_abs, tag = 'smem constant byte address 0x4 - core index']
  #allocation1 [shape = 'u32[144,128]{1,0:T(1,128)}', space=vmem, size = 0x12000, scoped, tag = 'internal scratch']
  %s0 = inlined_call_operand.vmem [shape: f32[2,4,256], index: 0, kind: input, shape index: {}]
  %s1 = inlined_call_operand.vmem [shape: bf16[4,896], index: 1, kind: input, shape index: {}]
  %s2 = inlined_call_operand.vmem [shape: f32[2,1152], index: 2, kind: output, shape index: {}]
  %s3 = sld [smem:[#allocation0]]
  $region18: #{model_forward.1} parent=0
    _
  %s5 = ssub.s32 1, %s3
  %s6 = scalar_select 0, %s5, %s3
  // Predicated region
  $region2: #{model_forward.1} parent=0 // pred_check
    _
  $region3: #{model_forward.1} parent=0 // pred_check_branch
    %8 = sbr.rel (0) target = $region5
  $region4: #{model_forward.1} parent=0 // pred_region
    _
  $region5: #{model_forward.1} parent=0 // pred_fallthru
    _
  // Predicated region
  $region6: #{model_forward.1} parent=0 // pred_check
    _
  $region7: #{model_forward.1} parent=0 // pred_check_branch
    %10 = sbr.rel (0) target = $region9
  $region8: #{model_forward.1} parent=0 // pred_region
    _
  $region9: #{model_forward.1} parent=0 // pred_fallthru
    _
  %v12 = vld [vmem:[%s0] sm:$0xff]
  %v13 = vld [vmem:[%s0 + $0x8] sm:$0xff]
  %v16 = vcombine.high %v12, %v12
  %v17 = vcombine.high %v13, %v13
  %vm20 = vcmask 1043456
  %v21 = vsel %vm20, %v12, 0.0
  %v22 = vsel %vm20, %v16, 0.0
  %v23 = vadd.f32 %v21, %v22
  %24 = vadd.xlane.f32.xlu0 %v23
  %v25 = vpop.xlane.xlu0 %24
  %v26 = vsel %vm20, %v13, 0.0
  %v27 = vsel %vm20, %v17, 0.0
  %v28 = vadd.f32 %v26, %v27
  %29 = vadd.xlane.f32.xlu0 %v28
  %v30 = vpop.xlane.xlu0 %29
  %v31 = vrcp.pop 256.0
  %v32 = vmul.f32 %v25, %v31
  %v33 = vmul.f32 %v30, %v31
  %v34 = vpack.c.bf16 %v32, %v32
  %v35 = vpack.c.bf16 %v33, %v33
  %v36 = vld [vmem:[%s1] sm:$0xff]
  %v37 = vld [vmem:[%s1 + $0x8] sm:$0x3f]
  %v40 = vunpack.c.l.b16 %v34
  %v41 = vunpack.c.l.b16 %v35
  %v42 = vlaneseq
  %v43 = vand.u32 %v42, 127
  %v44 = vlaneseq
  %v45 = vshrl.u32 %v44, 7
  %v46 = vsub.s32 %v43, %v45
  %v47 = vrot.slane %v40, %v46
  %v48 = vlaneseq
  %v49 = vshrl.u32 %v48, 7
  %v50 = vsub.s32 %v43, %v49
  %v51 = vrot.slane %v41, %v50
  %vm52 = vcmask 1041409
  %v53 = vsel %vm52, %v51, %v47
  %v54 = vpack.c.b16 %v53, %v53
  %v57 = vcombine.high %v36, %v36
  %v59 = vunpack.c.l.s4 1983009808
  %v60 = vunpack.c.0.s8 %v59
  %v61 = vlaneseq
  %v62 = vshrl.u32 %v61, 7
  %v63 = vsub.s32 %v60, %v62
  %v64 = vrot.slane %v36, %v63
  %v66 = vunpack.c.l.s4 1983009808
  %v67 = vunpack.c.0.s8 %v66
  %v68 = vlaneseq
  %v69 = vshrl.u32 %v68, 7
  %v70 = vsub.s32 %v67, %v69
  %v71 = vrot.slane %v57, %v70
  %v72 = vcombine.high %v64, %v64
  %v73 = vcombine.high %v71, %v71
  %v74 = vcombine.high %v37, %v37
  %v76 = vunpack.c.l.s4 1983009808
  %v77 = vunpack.c.0.s8 %v76
  %v78 = vlaneseq
  %v79 = vshrl.u32 %v78, 7
  %v80 = vsub.s32 %v77, %v79
  %v81 = vrot.slane %v37, %v80
  %v83 = vunpack.c.l.s4 1983009808
  %v84 = vunpack.c.0.s8 %v83
  %v85 = vlaneseq
  %v86 = vshrl.u32 %v85, 7
  %v87 = vsub.s32 %v84, %v86
  %v88 = vrot.slane %v74, %v87
  %v89 = vcombine.high %v81, %v81
  %vm90 = vcmask 31744
  %v92 = vsel %vm90, %v54, 0
  %vm94 = vcmask 1041408
  %v96 = vsel %vm94, %v64, 0
  %v99 = vsel %vm94, %v72, 0
  %v102 = vsel %vm94, %v71, 0
  %v105 = vsel %vm94, %v73, 0
  %v108 = vsel %vm94, %v81, 0
  %v111 = vsel %vm94, %v89, 0
  %v114 = vsel %vm94, %v88, 0
  %116 = vmatprep.subr.bf16.mxu0 %v99
  %117 = vmatpush1.bf16.msra.mxu0 %v96
  %118 = vmatprep.subr.bf16.mxu0 0
  %119 = vmatpush1.bf16.msra.mxu0 0
  %120 = vmatprep.subr.bf16.mxu0 0
  %121 = vmatpush1.bf16.msra.mxu0 0
  %122 = vmatprep.subr.bf16.mxu0 0
  %123 = vmatpush1.bf16.msra.mxu0 0
  %124 = vmatprep.subr.bf16.mxu0 0
  %125 = vmatpush1.bf16.msra.mxu0 0
  %126 = vmatprep.subr.bf16.mxu0 0
  %127 = vmatpush1.bf16.msra.mxu0 0
  %128 = vmatprep.subr.bf16.mxu0 0
  %129 = vmatpush1.bf16.msra.mxu0 0
  %130 = vmatprep.subr.bf16.mxu0 0
  %131 = vmatpush1.bf16.msra.mxu0 0
  %132 = vmatprep.subr.bf16.mxu0 0
  %133 = vmatpush1.bf16.msra.mxu0 0
  %134 = vmatprep.subr.bf16.mxu0 0
  %135 = vmatpush1.bf16.msra.mxu0 0
  %136 = vmatprep.subr.bf16.mxu0 0
  %137 = vmatpush1.bf16.msra.mxu0 0
  %138 = vmatprep.subr.bf16.mxu0 0
  %139 = vmatpush1.bf16.msra.mxu0 0
  %140 = vmatprep.subr.bf16.mxu0 0
  %141 = vmatpush1.bf16.msra.mxu0 0
  %142 = vmatprep.subr.bf16.mxu0 0
  %143 = vmatpush1.bf16.msra.mxu0 0
  %144 = vmatprep.subr.bf16.mxu0 0
  %145 = vmatpush1.bf16.msra.mxu0 0
  %146 = vmatprep.subr.bf16.mxu0 0
  %147 = vmatpush1.bf16.msra.mxu0 0
  %148 = vmatprep.mubr.bf16.mxu0 0
  %149 = vmatmul.mubr.bf16.gmra.mrb[0].mxu0 %v92
  %v150 = vpop.f32.mrb[0].mxu0
  %v151 = vadd.f32 0.0, %v150
  %v152 = vpop.f32.mrb[0].mxu0
  %v153 = vadd.f32 0.0, %v152
  %v154 = vpop.f32.mrb[0].mxu0
  %v155 = vpop.f32.mrb[0].mxu0
  %156 = vdwg.mxu0
  %157 = vmatprep.subr.bf16.mxu0 %v105
  %158 = vmatpush1.bf16.msra.mxu0 %v102
  %159 = vmatprep.subr.bf16.mxu0 0
  %160 = vmatpush1.bf16.msra.mxu0 0
  %161 = vmatprep.subr.bf16.mxu0 0
  %162 = vmatpush1.bf16.msra.mxu0 0
  %163 = vmatprep.subr.bf16.mxu0 0
  %164 = vmatpush1.bf16.msra.mxu0 0
  %165 = vmatprep.subr.bf16.mxu0 0
  %166 = vmatpush1.bf16.msra.mxu0 0
  %167 = vmatprep.subr.bf16.mxu0 0
  %168 = vmatpush1.bf16.msra.mxu0 0
  %169 = vmatprep.subr.bf16.mxu0 0
  %170 = vmatpush1.bf16.msra.mxu0 0
  %171 = vmatprep.subr.bf16.mxu0 0
  %172 = vmatpush1.bf16.msra.mxu0 0
  %173 = vmatprep.subr.bf16.mxu0 0
  %174 = vmatpush1.bf16.msra.mxu0 0
  %175 = vmatprep.subr.bf16.mxu0 0
  %176 = vmatpush1.bf16.msra.mxu0 0
  %177 = vmatprep.subr.bf16.mxu0 0
  %178 = vmatpush1.bf16.msra.mxu0 0
  %179 = vmatprep.subr.bf16.mxu0 0
  %180 = vmatpush1.bf16.msra.mxu0 0
  %181 = vmatprep.subr.bf16.mxu0 0
  %182 = vmatpush1.bf16.msra.mxu0 0
  %183 = vmatprep.subr.bf16.mxu0 0
  %184 = vmatpush1.bf16.msra.mxu0 0
  %185 = vmatprep.subr.bf16.mxu0 0
  %186 = vmatpush1.bf16.msra.mxu0 0
  %187 = vmatprep.subr.bf16.mxu0 0
  %188 = vmatpush1.bf16.msra.mxu0 0
  %189 = vmatprep.mubr.bf16.mxu0 0
  %190 = vmatmul.mubr.bf16.gmra.mrb[0].mxu0 %v92
  %v191 = vpop.f32.mrb[0].mxu0
  %v192 = vadd.f32 0.0, %v191
  %v193 = vpop.f32.mrb[0].mxu0
  %v194 = vadd.f32 0.0, %v193
  %v195 = vpop.f32.mrb[0].mxu0
  %v196 = vpop.f32.mrb[0].mxu0
  %197 = vdwg.mxu0
  %198 = vmatprep.subr.bf16.mxu0 %v111
  %199 = vmatpush1.bf16.msra.mxu0 %v108
  %200 = vmatprep.subr.bf16.mxu0 0
  %201 = vmatpush1.bf16.msra.mxu0 0
  %202 = vmatprep.subr.bf16.mxu0 0
  %203 = vmatpush1.bf16.msra.mxu0 0
  %204 = vmatprep.subr.bf16.mxu0 0
  %205 = vmatpush1.bf16.msra.mxu0 0
  %206 = vmatprep.subr.bf16.mxu0 0
  %207 = vmatpush1.bf16.msra.mxu0 0
  %208 = vmatprep.subr.bf16.mxu0 0
  %209 = vmatpush1.bf16.msra.mxu0 0
  %210 = vmatprep.subr.bf16.mxu0 0
  %211 = vmatpush1.bf16.msra.mxu0 0
  %212 = vmatprep.subr.bf16.mxu0 0
  %213 = vmatpush1.bf16.msra.mxu0 0
  %214 = vmatprep.subr.bf16.mxu0 0
  %215 = vmatpush1.bf16.msra.mxu0 0
  %216 = vmatprep.subr.bf16.mxu0 0
  %217 = vmatpush1.bf16.msra.mxu0 0
  %218 = vmatprep.subr.bf16.mxu0 0
  %219 = vmatpush1.bf16.msra.mxu0 0
  %220 = vmatprep.subr.bf16.mxu0 0
  %221 = vmatpush1.bf16.msra.mxu0 0
  %222 = vmatprep.subr.bf16.mxu0 0
  %223 = vmatpush1.bf16.msra.mxu0 0
  %224 = vmatprep.subr.bf16.mxu0 0
  %225 = vmatpush1.bf16.msra.mxu0 0
  %226 = vmatprep.subr.bf16.mxu0 0
  %227 = vmatpush1.bf16.msra.mxu0 0
  %228 = vmatprep.subr.bf16.mxu0 0
  %229 = vmatpush1.bf16.msra.mxu0 0
  %230 = vmatprep.mubr.bf16.mxu0 0
  %231 = vmatmul.mubr.bf16.gmra.mrb[0].mxu0 %v92
  %v232 = vpop.f32.mrb[0].mxu0
  %v233 = vadd.f32 0.0, %v232
  %v234 = vpop.f32.mrb[0].mxu0
  %v235 = vadd.f32 0.0, %v234
  %v236 = vpop.f32.mrb[0].mxu0
  %v237 = vpop.f32.mrb[0].mxu0
  %238 = vdwg.mxu0
  %239 = vmatprep.subr.bf16.mxu0 0
  %240 = vmatpush1.bf16.msra.mxu0 %v114
  %241 = vmatprep.subr.bf16.mxu0 0
  %242 = vmatpush1.bf16.msra.mxu0 0
  %243 = vmatprep.subr.bf16.mxu0 0
  %244 = vmatpush1.bf16.msra.mxu0 0
  %245 = vmatprep.subr.bf16.mxu0 0
  %246 = vmatpush1.bf16.msra.mxu0 0
  %247 = vmatprep.subr.bf16.mxu0 0
  %248 = vmatpush1.bf16.msra.mxu0 0
  %249 = vmatprep.subr.bf16.mxu0 0
  %250 = vmatpush1.bf16.msra.mxu0 0
  %251 = vmatprep.subr.bf16.mxu0 0
  %252 = vmatpush1.bf16.msra.mxu0 0
  %253 = vmatprep.subr.bf16.mxu0 0
  %254 = vmatpush1.bf16.msra.mxu0 0
  %255 = vmatprep.subr.bf16.mxu0 0
  %256 = vmatpush1.bf16.msra.mxu0 0
  %257 = vmatprep.subr.bf16.mxu0 0
  %258 = vmatpush1.bf16.msra.mxu0 0
  %259 = vmatprep.subr.bf16.mxu0 0
  %260 = vmatpush1.bf16.msra.mxu0 0
  %261 = vmatprep.subr.bf16.mxu0 0
  %262 = vmatpush1.bf16.msra.mxu0 0
  %263 = vmatprep.subr.bf16.mxu0 0
  %264 = vmatpush1.bf16.msra.mxu0 0
  %265 = vmatprep.subr.bf16.mxu0 0
  %266 = vmatpush1.bf16.msra.mxu0 0
  %267 = vmatprep.subr.bf16.mxu0 0
  %268 = vmatpush1.bf16.msra.mxu0 0
  %269 = vmatprep.subr.bf16.mxu0 0
  %270 = vmatpush1.bf16.msra.mxu0 0
  %271 = vmatprep.mubr.bf16.mxu0 0
  %272 = vmatmul.mubr.bf16.gmra.mrb[0].mxu0 %v92
  %v273 = vpop.f32.mrb[0].mxu0
  %v274 = vadd.f32 0.0, %v273
  %v275 = vpop.f32.mrb[0].mxu0
  %v276 = vpop.f32.mrb[0].mxu0
  %v277 = vpop.f32.mrb[0].mxu0
  %278 = vdwg.mxu0
  %v279 = vxor.u32 %v274, 2147483648
  %v280 = vmul.f32 %v279, 1.442695
  %v281 = vpow.pop %v280
  %v282 = vadd.f32 %v281, 1.0
  %v283 = vrcp.pop %v282
  %v284 = vmul.f32 1.0, %v283
  %v285 = vmul.f32 %v284, 56.381863
  %287 = vset.pattern.permute.xlu0 2
  %288 = vperm.xlu0 %287, %v285
  %v289 = vpop.permute.xlu0 %288
  %v291 = vadd.f32 %v192, %v289
  %v292 = vadd.f32 %v291, 0.0001
  %294 = vset.pattern.permute.xlu0 0
  %295 = vperm.xlu0 %294, %v274
  %v296 = vpop.permute.xlu0 %295
  %v298 = vadd.f32 %v151, %v296
  %v299 = vrcp.pop %v292
  %v300 = vmul.f32 %v298, %v299
  %v301 = vmul.f32 %v300, 5000.0
  %v302 = vadd.f32 %v301, 96.0
  %303 = vset.pattern.permute.xlu0 1
  %304 = vperm.xlu0 %303, %v274
  %v305 = vpop.permute.xlu0 %304
  %v307 = vadd.f32 %v153, %v305
  %v308 = vmul.f32 %v307, %v299
  %v309 = vmul.f32 %v308, 5000.0
  %v310 = vadd.f32 %v309, 128.0
  %v311 = vrcp.pop 192.0
  %v312 = vmul.f32 %v302, %v311
  %v313 = vmul.f32 %v312, 6.0
  %v314 = vmul.f32 %v310, %v31
  %v315 = vmul.f32 %v314, 8.0
  %vm316 = vcmp.ge.s32.totalorder %v43, 20
  %vm317 = vcmp.le.s32.totalorder %v43, 24
  %vm318 = vmand %vm316, %vm317
  %vm319 = vcmp.ge.s32.totalorder %v43, 25
  %vm320 = vcmp.le.s32.totalorder %v43, 29
  %vm321 = vmand %vm319, %vm320
  %vm322 = vcmp.ge.s32.totalorder %v43, 30
  %vm323 = vcmp.le.s32.totalorder %v43, 39
  %vm324 = vmand %vm322, %vm323
  %vm325 = vcmp.eq.s32.totalorder %v43, 0
  %vm326 = vcmp.eq.s32.totalorder %v43, 1
  %vm327 = vcmp.eq.s32.totalorder %v43, 2
  %v328 = vsel %vm327, 1, 0
  %vm329 = vcmp.eq.s32.totalorder %v328, 1
  %v330 = vsel %vm329, %v289, 0.0
  %v331 = vsel %vm326, 1, 0
  %vm332 = vcmp.eq.s32.totalorder %v331, 1
  %v333 = vsel %vm332, %v305, %v330
  %v334 = vsel %vm325, 1, 0
  %vm335 = vcmp.eq.s32.totalorder %v334, 1
  %v336 = vsel %vm335, %v296, %v333
  %337 = vst [vmem:[%s2] sm:$0x3] %v313
  %338 = vst [vmem:[%s2 + $0x2] sm:$0x3] %v315
  %v339 = vsel %vm324, 1, 0
  %vm340 = vcmp.eq.s32.totalorder %v339, 1
  %342 = vset.pattern.permute.xlu0 12
  %343 = vperm.xlu0 %342, %v151
  %v344 = vpop.permute.xlu0 %343
  %346 = vset.pattern.permute.xlu0 0
  %347 = vperm.xlu0 %346, %v151
  %v348 = vpop.permute.xlu0 %347
  %v350 = vsel %vm340, %v344, %v348
  %v351 = vsel %vm321, 1, 0
  %vm352 = vcmp.eq.s32.totalorder %v351, 1
  %353 = vset.pattern.permute.xlu0 8
  %354 = vperm.xlu0 %353, %v151
  %v355 = vpop.permute.xlu0 %354
  %v357 = vsel %vm352, %v355, %v350
  %v358 = vsel %vm318, 1, 0
  %vm359 = vcmp.eq.s32.totalorder %v358, 1
  %360 = vset.pattern.permute.xlu0 4
  %361 = vperm.xlu0 %360, %v151
  %v362 = vpop.permute.xlu0 %361
  %v364 = vsel %vm359, %v362, %v357
  %v365 = vsub.f32 %v151, %v364
  %366 = vst [vmem:[%s2 + $0x4] sm:$0x3] %v365
  %368 = vset.pattern.permute.xlu0 12
  %369 = vperm.xlu0 %368, %v153
  %v370 = vpop.permute.xlu0 %369
  %372 = vset.pattern.permute.xlu0 0
  %373 = vperm.xlu0 %372, %v153
  %v374 = vpop.permute.xlu0 %373
  %v376 = vsel %vm340, %v370, %v374
  %377 = vset.pattern.permute.xlu0 8
  %378 = vperm.xlu0 %377, %v153
  %v379 = vpop.permute.xlu0 %378
  %v381 = vsel %vm352, %v379, %v376
  %382 = vset.pattern.permute.xlu0 4
  %383 = vperm.xlu0 %382, %v153
  %v384 = vpop.permute.xlu0 %383
  %v386 = vsel %vm359, %v384, %v381
  %v387 = vsub.f32 %v153, %v386
  %388 = vst [vmem:[%s2 + $0x6] sm:$0x3] %v387
  %390 = vset.pattern.permute.xlu0 12
  %391 = vperm.xlu0 %390, %v192
  %v392 = vpop.permute.xlu0 %391
  %394 = vset.pattern.permute.xlu0 0
  %395 = vperm.xlu0 %394, %v192
  %v396 = vpop.permute.xlu0 %395
  %v398 = vsel %vm340, %v392, %v396
  %399 = vset.pattern.permute.xlu0 8
  %400 = vperm.xlu0 %399, %v192
  %v401 = vpop.permute.xlu0 %400
  %v403 = vsel %vm352, %v401, %v398
  %404 = vset.pattern.permute.xlu0 4
  %405 = vperm.xlu0 %404, %v192
  %v406 = vpop.permute.xlu0 %405
  %v408 = vsel %vm359, %v406, %v403
  %v409 = vsub.f32 %v192, %v408
  %410 = vst [vmem:[%s2 + $0x8] sm:$0x3] %v409
  %v411 = vadd.f32 %v194, %v296
  %412 = vst [vmem:[%s2 + $0xa] sm:$0x3] %v411
  %v413 = vadd.f32 %v233, %v305
  %414 = vst [vmem:[%s2 + $0xc] sm:$0x3] %v413
  %v415 = vadd.f32 %v235, %v289
  %416 = vst [vmem:[%s2 + $0xe] sm:$0x3] %v415
  %417 = vst [vmem:[%s2 + $0x10] sm:$0x3] %v336
  // Predicated region
  $region10: #{model_forward.1} parent=0 // pred_check
    _
  $region11: #{model_forward.1} parent=0 // pred_check_branch
    %419 = sbr.rel (0) target = $region13
  $region12: #{model_forward.1} parent=0 // pred_region
    _
  $region13: #{model_forward.1} parent=0 // pred_fallthru
    _
  // Predicated region
  $region14: #{model_forward.1} parent=0 // pred_check
    _
  $region15: #{model_forward.1} parent=0 // pred_check_branch
    %421 = sbr.rel (0) target = $region17
  $region16: #{model_forward.1} parent=0 // pred_region
    _
  $region17: #{model_forward.1} parent=0 // pred_fallthru
    _

</llo_original>
